<compile_context>
chip_gen: v7x
topology: tpu7x:2x2x1
jax: 0.10.0
libtpu: 0.0.40
codegen_flags: <defaults>
</compile_context>

<pallas_src>
import jax
import jax.numpy as jnp
from jax.experimental import pallas as pl
from jax.experimental.pallas import tpu as pltpu
import numpy as np

PIX = 8
DIMS = [PIX ** 2,
        (PIX - 1) ** 2,
        (PIX - 1) ** 2,
        (PIX - 2) ** 2,
        (PIX - 3) ** 2,
        (PIX - 4) ** 2,
        1]


def _mlp_kernel(x_ref,
                w1_ref, b1_ref,
                w2_ref, b2_ref,
                w3_ref, b3_ref,
                w4_ref, b4_ref,
                w5_ref, b5_ref,
                w6_ref, b6_ref,
                o_ref):
    """Fused 6-layer MLP forward for one batch tile, batch on the lane axis."""
    h = x_ref[...]                                             # (64, bt) bf16

    # fc1..fc4: bf16 MXU matmul, f32 accumulate, f32 bias + ReLU, downcast.
    for w_ref, b_ref in ((w1_ref, b1_ref), (w2_ref, b2_ref),
                         (w3_ref, b3_ref), (w4_ref, b4_ref)):
        z = jnp.dot(w_ref[...], h, preferred_element_type=jnp.float32)
        h = jnp.maximum(z + b_ref[...], 0.0).astype(jnp.bfloat16)

    # fc5: keep the activation in f32 for the final VPU/XLU reduce.
    z = jnp.dot(w5_ref[...], h, preferred_element_type=jnp.float32)
    h5 = jnp.maximum(z + b5_ref[...], 0.0)                     # (16, bt) f32

    # fc6 (out_features = 1): VPU multiply + sublane reduce instead of an
    # M=1 MXU matmul (avoids paying a full MXU push/pop for one column).
    w6 = w6_ref[...].astype(jnp.float32)                       # (16, 1) f32
    acc = jnp.sum(w6 * h5, axis=0, keepdims=True)              # (1, bt) f32
    o_ref[...] = acc + b6_ref[...]                             # lane-dense store


def _pick_batch_tile(B):
    """Prefer >=2 grid steps with a 128-multiple tile; fall back to one tile."""
    for t in (512, 256, 128):
        if B % t == 0 and B // t >= 2:
            return t
    return B


def svrg_baseline_forward(x, params, *, batch_tile=None):
    """x: (B, PIX**2) float32.  params: list of (W, b) in PyTorch layout,
    i.e. W: (out_features, in_features), b: (out_features,).  Returns (B, 1) f32."""
    B, D_in = x.shape
    assert D_in == DIMS[0]
    if batch_tile is None:
        batch_tile = _pick_batch_tile(B)
    assert B % batch_tile == 0
    # (8,128) tiling constraint: lane dim of every block must be a multiple of
    # 128 or equal to the full array extent.
    assert batch_tile == B or batch_tile % 128 == 0
    grid = (B // batch_tile,)

    # Transposed, bf16 input: batch on lanes.  (layout plumbing in the wrapper)
    x_t = x.T.astype(jnp.bfloat16)                             # (64, B)

    in_specs = [pl.BlockSpec((DIMS[0], batch_tile), lambda i: (0, i))]
    flat_params = []
    for li, (w, b) in enumerate(params):
        d_in, d_out = DIMS[li], DIMS[li + 1]
        assert w.shape == (d_out, d_in) and b.shape == (d_out,)
        if li < 5:
            w_k = w.astype(jnp.bfloat16)                       # (d_out, d_in)
            b_k = b.reshape(d_out, 1).astype(jnp.float32)      # (d_out, 1)
        else:
            # fc6 weight as a bf16 column for the VPU multiply + sublane reduce.
            w_k = w.reshape(d_in, 1).astype(jnp.bfloat16)      # (16, 1)
            b_k = b.reshape(1, 1).astype(jnp.float32)          # (1, 1)
        in_specs.append(pl.BlockSpec(w_k.shape, lambda i: (0, 0)))
        in_specs.append(pl.BlockSpec(b_k.shape, lambda i: (0, 0)))
        flat_params.extend([w_k, b_k])

    out_spec = pl.BlockSpec((1, batch_tile), lambda i: (0, i))

    flops = 2 * B * sum(DIMS[i] * DIMS[i + 1] for i in range(6))
    param_bytes = sum(2 * DIMS[i] * DIMS[i + 1] + 4 * DIMS[i + 1] for i in range(6))
    cost = pl.CostEstimate(flops=flops, transcendentals=0,
                           bytes_accessed=2 * B * DIMS[0] + 4 * B + param_bytes)

    out_t = pl.pallas_call(
        _mlp_kernel,
        out_shape=jax.ShapeDtypeStruct((1, B), jnp.float32),
        grid_spec=pl.GridSpec(
            grid=grid,
            in_specs=in_specs,
            out_specs=out_spec,
        ),
        compiler_params=pltpu.CompilerParams(
            dimension_semantics=("parallel",)),
        cost_estimate=cost,
    )(x_t, *flat_params)

    return out_t.T                                             # (B, 1)


def init_params(key):
    """Deterministic init matching nn.Linear's default U(-1/sqrt(in), 1/sqrt(in)).
    Weights are stored in PyTorch layout: W (out_features, in_features), b (out,)."""
    params = []
    for li in range(6):
        d_in, d_out = DIMS[li], DIMS[li + 1]
        key, kw, kb = jax.random.split(key, 3)
        bound = 1.0 / np.sqrt(d_in)
        w = jax.random.uniform(kw, (d_out, d_in), jnp.float32, -bound, bound)
        b = jax.random.uniform(kb, (d_out,), jnp.float32, -bound, bound)
        params.append((w, b))
    return params


def reference_forward(x, params):
    """Module forward mirrored with the kernel's numerics:
    bf16 matmul inputs, f32 accumulation, f32 bias + ReLU."""
    h = x.astype(jnp.bfloat16)
    for li in range(5):
        w, b = params[li]
        z = jnp.dot(h, w.astype(jnp.bfloat16).T,
                    preferred_element_type=jnp.float32) + b
        h = jnp.maximum(z, 0.0)
        if li < 4:
            h = h.astype(jnp.bfloat16)
    w6, b6 = params[5]
    return jnp.dot(h, w6.astype(jnp.bfloat16).astype(jnp.float32).T) + b6


if __name__ == "__main__":
    key = jax.random.PRNGKey(0)
    key, kx = jax.random.split(key)

    B = 256                                # -> batch_tile 128, grid of 2 steps
    x = jax.random.normal(kx, (B, PIX ** 2), jnp.float32)
    params = init_params(key)

    out = jax.block_until_ready(svrg_baseline_forward(x, params))
    assert out.shape == (B, 1)

    ref = jax.block_until_ready(reference_forward(x, params))
    np.testing.assert_allclose(np.asarray(out), np.asarray(ref),
                               rtol=5e-3, atol=1e-3)

    print("KERNEL_OK")
</pallas_src>

<mosaic_0001>
module attributes {stable_mosaic.version = 11 : i64} {
  func.func @_mlp_kernel(%arg0: i32, %arg1: memref<64x128xbf16, #tpu.memory_space<vmem>>, %arg2: memref<49x64xbf16, #tpu.memory_space<vmem>>, %arg3: memref<49x1xf32, #tpu.memory_space<vmem>>, %arg4: memref<49x49xbf16, #tpu.memory_space<vmem>>, %arg5: memref<49x1xf32, #tpu.memory_space<vmem>>, %arg6: memref<36x49xbf16, #tpu.memory_space<vmem>>, %arg7: memref<36x1xf32, #tpu.memory_space<vmem>>, %arg8: memref<25x36xbf16, #tpu.memory_space<vmem>>, %arg9: memref<25x1xf32, #tpu.memory_space<vmem>>, %arg10: memref<16x25xbf16, #tpu.memory_space<vmem>>, %arg11: memref<16x1xf32, #tpu.memory_space<vmem>>, %arg12: memref<16x1xbf16, #tpu.memory_space<vmem>>, %arg13: memref<1x1xf32, #tpu.memory_space<vmem>>, %arg14: memref<1x128xf32, #tpu.memory_space<vmem>>) attributes {dimension_semantics = [#tpu.dimension_semantics<parallel>], iteration_bounds = array<i64: 2>, scalar_prefetch = 0 : i64, scratch_operands = 0 : i64, tpu.core_type = #tpu.core_type<tc>, window_params = [{transform_indices = @transform_0, window_bounds = array<i64: 64, 128>}, {pipeline_mode = #tpu.pipeline_mode<synchronous>, transform_indices = @transform_1, window_bounds = array<i64: 49, 64>}, {pipeline_mode = #tpu.pipeline_mode<synchronous>, transform_indices = @transform_2, window_bounds = array<i64: 49, 1>}, {pipeline_mode = #tpu.pipeline_mode<synchronous>, transform_indices = @transform_3, window_bounds = array<i64: 49, 49>}, {pipeline_mode = #tpu.pipeline_mode<synchronous>, transform_indices = @transform_4, window_bounds = array<i64: 49, 1>}, {pipeline_mode = #tpu.pipeline_mode<synchronous>, transform_indices = @transform_5, window_bounds = array<i64: 36, 49>}, {pipeline_mode = #tpu.pipeline_mode<synchronous>, transform_indices = @transform_6, window_bounds = array<i64: 36, 1>}, {pipeline_mode = #tpu.pipeline_mode<synchronous>, transform_indices = @transform_7, window_bounds = array<i64: 25, 36>}, {pipeline_mode = #tpu.pipeline_mode<synchronous>, transform_indices = @transform_8, window_bounds = array<i64: 25, 1>}, {pipeline_mode = #tpu.pipeline_mode<synchronous>, transform_indices = @transform_9, window_bounds = array<i64: 16, 25>}, {pipeline_mode = #tpu.pipeline_mode<synchronous>, transform_indices = @transform_10, window_bounds = array<i64: 16, 1>}, {pipeline_mode = #tpu.pipeline_mode<synchronous>, transform_indices = @transform_11, window_bounds = array<i64: 16, 1>}, {pipeline_mode = #tpu.pipeline_mode<synchronous>, transform_indices = @transform_12, window_bounds = array<i64: 1, 1>}, {transform_indices = @transform_13, window_bounds = array<i64: 1, 128>}]} {
    %c0 = arith.constant 0 : index
    %c0_0 = arith.constant 0 : index
    %0 = vector.load %arg1[%c0, %c0_0] : memref<64x128xbf16, #tpu.memory_space<vmem>>, vector<64x128xbf16>
    %c0_1 = arith.constant 0 : index
    %c0_2 = arith.constant 0 : index
    %1 = vector.load %arg2[%c0_1, %c0_2] : memref<49x64xbf16, #tpu.memory_space<vmem>>, vector<49x64xbf16>
    %cst = arith.constant dense<0.000000e+00> : vector<49x128xf32>
    %2 = tpu.matmul %1, %0, %cst {dimension_numbers = #tpu.dot_dimension_numbers<[1], [0], [0], [1], [0, 0, 1, 1], [], []>} : vector<49x64xbf16>, vector<64x128xbf16>, vector<49x128xf32> -> vector<49x128xf32>
    %c0_3 = arith.constant 0 : index
    %c0_4 = arith.constant 0 : index
    %3 = vector.load %arg3[%c0_3, %c0_4] : memref<49x1xf32, #tpu.memory_space<vmem>>, vector<49x1xf32>
    %4 = vector.broadcast %3 : vector<49x1xf32> to vector<49x128xf32>
    %5 = arith.addf %2, %4 : vector<49x128xf32>
    %cst_5 = arith.constant 0.000000e+00 : f32
    %6 = vector.broadcast %cst_5 : f32 to vector<49x128xf32>
    %7 = arith.maximumf %5, %6 : vector<49x128xf32>
    %8 = arith.truncf %7 : vector<49x128xf32> to vector<49x128xbf16>
    %c0_6 = arith.constant 0 : index
    %c0_7 = arith.constant 0 : index
    %9 = vector.load %arg4[%c0_6, %c0_7] : memref<49x49xbf16, #tpu.memory_space<vmem>>, vector<49x49xbf16>
    %cst_8 = arith.constant dense<0.000000e+00> : vector<49x128xf32>
    %10 = tpu.matmul %9, %8, %cst_8 {dimension_numbers = #tpu.dot_dimension_numbers<[1], [0], [0], [1], [0, 0, 1, 1], [], []>} : vector<49x49xbf16>, vector<49x128xbf16>, vector<49x128xf32> -> vector<49x128xf32>
    %c0_9 = arith.constant 0 : index
    %c0_10 = arith.constant 0 : index
    %11 = vector.load %arg5[%c0_9, %c0_10] : memref<49x1xf32, #tpu.memory_space<vmem>>, vector<49x1xf32>
    %12 = vector.broadcast %11 : vector<49x1xf32> to vector<49x128xf32>
    %13 = arith.addf %10, %12 : vector<49x128xf32>
    %cst_11 = arith.constant 0.000000e+00 : f32
    %14 = vector.broadcast %cst_11 : f32 to vector<49x128xf32>
    %15 = arith.maximumf %13, %14 : vector<49x128xf32>
    %16 = arith.truncf %15 : vector<49x128xf32> to vector<49x128xbf16>
    %c0_12 = arith.constant 0 : index
    %c0_13 = arith.constant 0 : index
    %17 = vector.load %arg6[%c0_12, %c0_13] : memref<36x49xbf16, #tpu.memory_space<vmem>>, vector<36x49xbf16>
    %cst_14 = arith.constant dense<0.000000e+00> : vector<36x128xf32>
    %18 = tpu.matmul %17, %16, %cst_14 {dimension_numbers = #tpu.dot_dimension_numbers<[1], [0], [0], [1], [0, 0, 1, 1], [], []>} : vector<36x49xbf16>, vector<49x128xbf16>, vector<36x128xf32> -> vector<36x128xf32>
    %c0_15 = arith.constant 0 : index
    %c0_16 = arith.constant 0 : index
    %19 = vector.load %arg7[%c0_15, %c0_16] : memref<36x1xf32, #tpu.memory_space<vmem>>, vector<36x1xf32>
    %20 = vector.broadcast %19 : vector<36x1xf32> to vector<36x128xf32>
    %21 = arith.addf %18, %20 : vector<36x128xf32>
    %cst_17 = arith.constant 0.000000e+00 : f32
    %22 = vector.broadcast %cst_17 : f32 to vector<36x128xf32>
    %23 = arith.maximumf %21, %22 : vector<36x128xf32>
    %24 = arith.truncf %23 : vector<36x128xf32> to vector<36x128xbf16>
    %c0_18 = arith.constant 0 : index
    %c0_19 = arith.constant 0 : index
    %25 = vector.load %arg8[%c0_18, %c0_19] : memref<25x36xbf16, #tpu.memory_space<vmem>>, vector<25x36xbf16>
    %cst_20 = arith.constant dense<0.000000e+00> : vector<25x128xf32>
    %26 = tpu.matmul %25, %24, %cst_20 {dimension_numbers = #tpu.dot_dimension_numbers<[1], [0], [0], [1], [0, 0, 1, 1], [], []>} : vector<25x36xbf16>, vector<36x128xbf16>, vector<25x128xf32> -> vector<25x128xf32>
    %c0_21 = arith.constant 0 : index
    %c0_22 = arith.constant 0 : index
    %27 = vector.load %arg9[%c0_21, %c0_22] : memref<25x1xf32, #tpu.memory_space<vmem>>, vector<25x1xf32>
    %28 = vector.broadcast %27 : vector<25x1xf32> to vector<25x128xf32>
    %29 = arith.addf %26, %28 : vector<25x128xf32>
    %cst_23 = arith.constant 0.000000e+00 : f32
    %30 = vector.broadcast %cst_23 : f32 to vector<25x128xf32>
    %31 = arith.maximumf %29, %30 : vector<25x128xf32>
    %32 = arith.truncf %31 : vector<25x128xf32> to vector<25x128xbf16>
    %c0_24 = arith.constant 0 : index
    %c0_25 = arith.constant 0 : index
    %33 = vector.load %arg10[%c0_24, %c0_25] : memref<16x25xbf16, #tpu.memory_space<vmem>>, vector<16x25xbf16>
    %cst_26 = arith.constant dense<0.000000e+00> : vector<16x128xf32>
    %34 = tpu.matmul %33, %32, %cst_26 {dimension_numbers = #tpu.dot_dimension_numbers<[1], [0], [0], [1], [0, 0, 1, 1], [], []>} : vector<16x25xbf16>, vector<25x128xbf16>, vector<16x128xf32> -> vector<16x128xf32>
    %c0_27 = arith.constant 0 : index
    %c0_28 = arith.constant 0 : index
    %35 = vector.load %arg11[%c0_27, %c0_28] : memref<16x1xf32, #tpu.memory_space<vmem>>, vector<16x1xf32>
    %36 = vector.broadcast %35 : vector<16x1xf32> to vector<16x128xf32>
    %37 = arith.addf %34, %36 : vector<16x128xf32>
    %cst_29 = arith.constant 0.000000e+00 : f32
    %38 = vector.broadcast %cst_29 : f32 to vector<16x128xf32>
    %39 = arith.maximumf %37, %38 : vector<16x128xf32>
    %c0_30 = arith.constant 0 : index
    %c0_31 = arith.constant 0 : index
    %40 = vector.load %arg12[%c0_30, %c0_31] : memref<16x1xbf16, #tpu.memory_space<vmem>>, vector<16x1xbf16>
    %41 = arith.extf %40 : vector<16x1xbf16> to vector<16x1xf32>
    %42 = vector.broadcast %41 : vector<16x1xf32> to vector<16x128xf32>
    %43 = arith.mulf %42, %39 : vector<16x128xf32>
    %cst_32 = arith.constant dense<0.000000e+00> : vector<128xf32>
    %44 = vector.multi_reduction <add>, %43, %cst_32 [0] : vector<16x128xf32> to vector<128xf32>
    %45 = vector.shape_cast %44 : vector<128xf32> to vector<1x128xf32>
    %c0_33 = arith.constant 0 : index
    %c0_34 = arith.constant 0 : index
    %46 = vector.load %arg13[%c0_33, %c0_34] : memref<1x1xf32, #tpu.memory_space<vmem>>, vector<1x1xf32>
    %47 = vector.broadcast %46 : vector<1x1xf32> to vector<1x128xf32>
    %48 = arith.addf %45, %47 : vector<1x128xf32>
    %c0_35 = arith.constant 0 : index
    %c0_36 = arith.constant 0 : index
    %49 = vector.load %arg14[%c0_35, %c0_36] : memref<1x128xf32, #tpu.memory_space<vmem>>, vector<1x128xf32>
    tpu.vector_store %arg14[%c0_35, %c0_36], %48 {strides = array<i32>} : memref<1x128xf32, #tpu.memory_space<vmem>>, vector<1x128xf32>,
    return
  }
  func.func @transform_0(%arg0: i32) -> (i32, i32) {
    %c0_i32 = arith.constant 0 : i32
    %c0_i32_0 = arith.constant 0 : i32
    return %c0_i32, %arg0 : i32, i32
  }
  func.func @transform_1(%arg0: i32) -> (i32, i32) {
    %c0_i32 = arith.constant 0 : i32
    %c0_i32_0 = arith.constant 0 : i32
    %c0_i32_1 = arith.constant 0 : i32
    return %c0_i32, %c0_i32_0 : i32, i32
  }
  func.func @transform_2(%arg0: i32) -> (i32, i32) {
    %c0_i32 = arith.constant 0 : i32
    %c0_i32_0 = arith.constant 0 : i32
    %c0_i32_1 = arith.constant 0 : i32
    return %c0_i32, %c0_i32_0 : i32, i32
  }
  func.func @transform_3(%arg0: i32) -> (i32, i32) {
    %c0_i32 = arith.constant 0 : i32
    %c0_i32_0 = arith.constant 0 : i32
    %c0_i32_1 = arith.constant 0 : i32
    return %c0_i32, %c0_i32_0 : i32, i32
  }
  func.func @transform_4(%arg0: i32) -> (i32, i32) {
    %c0_i32 = arith.constant 0 : i32
    %c0_i32_0 = arith.constant 0 : i32
    %c0_i32_1 = arith.constant 0 : i32
    return %c0_i32, %c0_i32_0 : i32, i32
  }
  func.func @transform_5(%arg0: i32) -> (i32, i32) {
    %c0_i32 = arith.constant 0 : i32
    %c0_i32_0 = arith.constant 0 : i32
    %c0_i32_1 = arith.constant 0 : i32
    return %c0_i32, %c0_i32_0 : i32, i32
  }
  func.func @transform_6(%arg0: i32) -> (i32, i32) {
    %c0_i32 = arith.constant 0 : i32
    %c0_i32_0 = arith.constant 0 : i32
    %c0_i32_1 = arith.constant 0 : i32
    return %c0_i32, %c0_i32_0 : i32, i32
  }
  func.func @transform_7(%arg0: i32) -> (i32, i32) {
    %c0_i32 = arith.constant 0 : i32
    %c0_i32_0 = arith.constant 0 : i32
    %c0_i32_1 = arith.constant 0 : i32
    return %c0_i32, %c0_i32_0 : i32, i32
  }
  func.func @transform_8(%arg0: i32) -> (i32, i32) {
    %c0_i32 = arith.constant 0 : i32
    %c0_i32_0 = arith.constant 0 : i32
    %c0_i32_1 = arith.constant 0 : i32
    return %c0_i32, %c0_i32_0 : i32, i32
  }
  func.func @transform_9(%arg0: i32) -> (i32, i32) {
    %c0_i32 = arith.constant 0 : i32
    %c0_i32_0 = arith.constant 0 : i32
    %c0_i32_1 = arith.constant 0 : i32
    return %c0_i32, %c0_i32_0 : i32, i32
  }
  func.func @transform_10(%arg0: i32) -> (i32, i32) {
    %c0_i32 = arith.constant 0 : i32
    %c0_i32_0 = arith.constant 0 : i32
    %c0_i32_1 = arith.constant 0 : i32
    return %c0_i32, %c0_i32_0 : i32, i32
  }
  func.func @transform_11(%arg0: i32) -> (i32, i32) {
    %c0_i32 = arith.constant 0 : i32
    %c0_i32_0 = arith.constant 0 : i32
    %c0_i32_1 = arith.constant 0 : i32
    return %c0_i32, %c0_i32_0 : i32, i32
  }
  func.func @transform_12(%arg0: i32) -> (i32, i32) {
    %c0_i32 = arith.constant 0 : i32
    %c0_i32_0 = arith.constant 0 : i32
    %c0_i32_1 = arith.constant 0 : i32
    return %c0_i32, %c0_i32_0 : i32, i32
  }
  func.func @transform_13(%arg0: i32) -> (i32, i32) {
    %c0_i32 = arith.constant 0 : i32
    %c0_i32_0 = arith.constant 0 : i32
    return %c0_i32, %arg0 : i32, i32
  }
}

</mosaic_0001>

<llo_original>
// kernel: tpu_custom_call.1
$region0: #{tpu_custom_call.1}
  #allocation0 [shape = 'u32[]', space=smem, size = 0x4, offset = 0x4, fixed_abs, tag = 'smem constant byte address 0x4 - core index']
  #allocation1 [shape = 'u32[144,128]{1,0:T(1,128)}', space=vmem, size = 0x12000, scoped, tag = 'internal scratch']
  #allocation2 [shape = 'f32[1,1]{1,0:T(1,128)S(1)}', space=vmem, size = 0x200, scoped, tag = 'scoped memory for tpu_custom_call.1']
  %s0 = inlined_call_operand.vmem [shape: bf16[64,256], index: 0, kind: input, shape index: {}]
  %s1 = inlined_call_operand.vmem [shape: bf16[49,64], index: 1, kind: input, shape index: {}]
  %s2 = inlined_call_operand.vmem [shape: f32[49,1], index: 2, kind: input, shape index: {}]
  %s3 = inlined_call_operand.vmem [shape: bf16[49,49], index: 3, kind: input, shape index: {}]
  %s4 = inlined_call_operand.vmem [shape: f32[49,1], index: 4, kind: input, shape index: {}]
  %s5 = inlined_call_operand.vmem [shape: bf16[36,49], index: 5, kind: input, shape index: {}]
  %s6 = inlined_call_operand.vmem [shape: f32[36,1], index: 6, kind: input, shape index: {}]
  %s7 = inlined_call_operand.vmem [shape: bf16[25,36], index: 7, kind: input, shape index: {}]
  %s8 = inlined_call_operand.vmem [shape: f32[25,1], index: 8, kind: input, shape index: {}]
  %s9 = inlined_call_operand.vmem [shape: bf16[16,25], index: 9, kind: input, shape index: {}]
  %s10 = inlined_call_operand.vmem [shape: f32[16,1], index: 10, kind: input, shape index: {}]
  %s11 = inlined_call_operand.vmem [shape: bf16[16,1], index: 11, kind: input, shape index: {}]
  %s12 = inlined_call_operand.<no memory space> [shape: f32[1,1], index: 12, kind: input, shape index: {}]
  %s13 = inlined_call_operand.hbm [shape: f32[1,256], index: 13, kind: output, shape index: {}]
  %s14 = sld [smem:[#allocation0]]
  $region126: #{tpu_custom_call.1} parent=0
    _
  %s16 = ssub.s32 1, %s14
  %s17 = scalar_select 0, %s16, %s14
  %v18 = vstv %s12
  %19 = vst [vmem:[#allocation2] sm:$0x1] %v18
  $region1: #{tpu_custom_call.1} parent=0
    #allocation3 [shape = 'u8[32768]{0}', space=vmem, size = 0x8000, scoped, tag = 'input window, operand 0']
    #allocation4 [shape = 'u8[1024]{0}', space=vmem, size = 0x400, scoped, tag = 'output window, operand 0']
    #allocation5 [shape = 's32[2]{0}', space=sflag, size = 0x8, scoped, tag = 'scoped memory for tpu_custom_call.1']
    %20 = vsyncpa [#allocation5], 0
    %s21 = scalar_lea.sflag [#allocation5], 1
    %22 = vsyncpa %s21, 0
    loop: start=0, step=1, limit=4
    $region2: #{tpu_custom_call.1} parent=1 // loop_pre_header
      _
    $region3: #{tpu_custom_call.1} parent=1 // loop_header
      %s24 = sphi 0, %s28
      %p25 = scmp.ge.s32.totalorder %s24, 4
      %s34 = sphi 0, %s36
      %s37 = sphi 0, %s34
      %s38 = sphi 0, %s37
      %s54 = sphi 0, %s38
      %s58 = sphi 0, %s58
      %s60 = sphi 0, %s58
      %s61 = sphi 0, %s60
      %s75 = sphi 0, %s61
      %s79 = sphi 0, %s79
      %s81 = sphi 0, %s79
      %s82 = sphi 0, %s81
      %s96 = sphi 0, %s82
      %s100 = sphi 0, %s100
      %s102 = sphi 0, %s100
      %s103 = sphi 0, %s102
      %s117 = sphi 0, %s103
      %s121 = sphi 0, %s121
      %s123 = sphi 0, %s121
      %s124 = sphi 0, %s123
      %s138 = sphi 0, %s124
      %s142 = sphi 0, %s142
      %s144 = sphi 0, %s142
      %s145 = sphi 0, %s144
      %s159 = sphi 0, %s145
      %s163 = sphi 0, %s163
      %s165 = sphi 0, %s163
      %s166 = sphi 0, %s165
      %s180 = sphi 0, %s166
      %s184 = sphi 0, %s184
      %s186 = sphi 0, %s184
      %s187 = sphi 0, %s186
      %s201 = sphi 0, %s187
      %s205 = sphi 0, %s205
      %s207 = sphi 0, %s205
      %s208 = sphi 0, %s207
      %s222 = sphi 0, %s208
      %s226 = sphi 0, %s226
      %s228 = sphi 0, %s226
      %s229 = sphi 0, %s228
      %s243 = sphi 0, %s229
      %s247 = sphi 0, %s247
      %s249 = sphi 0, %s247
      %s250 = sphi 0, %s249
      %s264 = sphi 0, %s250
      %s268 = sphi 0, %s268
      %s270 = sphi 0, %s268
      %s271 = sphi 0, %s270
      %s285 = sphi 0, %s271
      %s289 = sphi 0, %s289
      %s291 = sphi 0, %s289
      %s292 = sphi 0, %s291
      %s306 = sphi 0, %s292
      %s312 = sphi 0, %s314
      %s315 = sphi 0, %s312
      %s316 = sphi 0, %s315
      %s332 = sphi 0, %s316
    $region4: #{tpu_custom_call.1} parent=1 // loop_header_branch
      %27 = sbr.rel (%p25) target = $region8
    $region5: #{tpu_custom_call.1} parent=1 // loop_body
      %s29 = ssub.s32 %s24, 1
      %s30 = ssub.s32 %s24, 2
      %s31 = sadd.s32 %s24, 1
      %s32 = ssub.s32 %s24, %s31
      %p33 = scmp.eq.s32.totalorder %s32, 0
      %s35 = sadd.s32 %s34, 1
      %s36 = scalar_select %p33, %s34, %s35
      %p39 = pneg %p33
      %p40 = scmp.eq.s32.totalorder %s24, 1
      %p41 = por %p39, %p40
      %p42 = scmp.ne.s32.totalorder %s34, %s37
      %p43 = scmp.eq.s32.totalorder %s24, 0
      %p44 = por %p42, %p43
      %p45 = scmp.ne.s32.totalorder %s34, %s37
      %p46 = scmp.eq.s32.totalorder %s29, 1
      %p47 = por %p45, %p46
      %p48 = scmp.ne.s32.totalorder %s37, %s38
      %p49 = scmp.eq.s32.totalorder %s29, 0
      %p50 = por %p48, %p49
      %p51 = scmp.ne.s32.totalorder %s37, %s38
      %p52 = scmp.eq.s32.totalorder %s30, 1
      %p53 = por %p51, %p52
      %p55 = scmp.ne.s32.totalorder %s38, %s54
      %p56 = scmp.eq.s32.totalorder %s30, 0
      %p57 = por %p55, %p56
      %s59 = sadd.s32 %s58, 1
      %p62 = scmp.eq.s32.totalorder %s24, 1
      %p63 = scmp.ne.s32.totalorder %s58, %s60
      %p64 = scmp.eq.s32.totalorder %s24, 0
      %p65 = por %p63, %p64
      %p66 = scmp.ne.s32.totalorder %s58, %s60
      %p67 = scmp.eq.s32.totalorder %s29, 1
      %p68 = por %p66, %p67
      %p69 = scmp.ne.s32.totalorder %s60, %s61
      %p70 = scmp.eq.s32.totalorder %s29, 0
      %p71 = por %p69, %p70
      %p72 = scmp.ne.s32.totalorder %s60, %s61
      %p73 = scmp.eq.s32.totalorder %s30, 1
      %p74 = por %p72, %p73
      %p76 = scmp.ne.s32.totalorder %s61, %s75
      %p77 = scmp.eq.s32.totalorder %s30, 0
      %p78 = por %p76, %p77
      %s80 = sadd.s32 %s79, 1
      %p83 = scmp.eq.s32.totalorder %s24, 1
      %p84 = scmp.ne.s32.totalorder %s79, %s81
      %p85 = scmp.eq.s32.totalorder %s24, 0
      %p86 = por %p84, %p85
      %p87 = scmp.ne.s32.totalorder %s79, %s81
      %p88 = scmp.eq.s32.totalorder %s29, 1
      %p89 = por %p87, %p88
      %p90 = scmp.ne.s32.totalorder %s81, %s82
      %p91 = scmp.eq.s32.totalorder %s29, 0
      %p92 = por %p90, %p91
      %p93 = scmp.ne.s32.totalorder %s81, %s82
      %p94 = scmp.eq.s32.totalorder %s30, 1
      %p95 = por %p93, %p94
      %p97 = scmp.ne.s32.totalorder %s82, %s96
      %p98 = scmp.eq.s32.totalorder %s30, 0
      %p99 = por %p97, %p98
      %s101 = sadd.s32 %s100, 1
      %p104 = scmp.eq.s32.totalorder %s24, 1
      %p105 = scmp.ne.s32.totalorder %s100, %s102
      %p106 = scmp.eq.s32.totalorder %s24, 0
      %p107 = por %p105, %p106
      %p108 = scmp.ne.s32.totalorder %s100, %s102
      %p109 = scmp.eq.s32.totalorder %s29, 1
      %p110 = por %p108, %p109
      %p111 = scmp.ne.s32.totalorder %s102, %s103
      %p112 = scmp.eq.s32.totalorder %s29, 0
      %p113 = por %p111, %p112
      %p114 = scmp.ne.s32.totalorder %s102, %s103
      %p115 = scmp.eq.s32.totalorder %s30, 1
      %p116 = por %p114, %p115
      %p118 = scmp.ne.s32.totalorder %s103, %s117
      %p119 = scmp.eq.s32.totalorder %s30, 0
      %p120 = por %p118, %p119
      %s122 = sadd.s32 %s121, 1
      %p125 = scmp.eq.s32.totalorder %s24, 1
      %p126 = scmp.ne.s32.totalorder %s121, %s123
      %p127 = scmp.eq.s32.totalorder %s24, 0
      %p128 = por %p126, %p127
      %p129 = scmp.ne.s32.totalorder %s121, %s123
      %p130 = scmp.eq.s32.totalorder %s29, 1
      %p131 = por %p129, %p130
      %p132 = scmp.ne.s32.totalorder %s123, %s124
      %p133 = scmp.eq.s32.totalorder %s29, 0
      %p134 = por %p132, %p133
      %p135 = scmp.ne.s32.totalorder %s123, %s124
      %p136 = scmp.eq.s32.totalorder %s30, 1
      %p137 = por %p135, %p136
      %p139 = scmp.ne.s32.totalorder %s124, %s138
      %p140 = scmp.eq.s32.totalorder %s30, 0
      %p141 = por %p139, %p140
      %s143 = sadd.s32 %s142, 1
      %p146 = scmp.eq.s32.totalorder %s24, 1
      %p147 = scmp.ne.s32.totalorder %s142, %s144
      %p148 = scmp.eq.s32.totalorder %s24, 0
      %p149 = por %p147, %p148
      %p150 = scmp.ne.s32.totalorder %s142, %s144
      %p151 = scmp.eq.s32.totalorder %s29, 1
      %p152 = por %p150, %p151
      %p153 = scmp.ne.s32.totalorder %s144, %s145
      %p154 = scmp.eq.s32.totalorder %s29, 0
      %p155 = por %p153, %p154
      %p156 = scmp.ne.s32.totalorder %s144, %s145
      %p157 = scmp.eq.s32.totalorder %s30, 1
      %p158 = por %p156, %p157
      %p160 = scmp.ne.s32.totalorder %s145, %s159
      %p161 = scmp.eq.s32.totalorder %s30, 0
      %p162 = por %p160, %p161
      %s164 = sadd.s32 %s163, 1
      %p167 = scmp.eq.s32.totalorder %s24, 1
      %p168 = scmp.ne.s32.totalorder %s163, %s165
      %p169 = scmp.eq.s32.totalorder %s24, 0
      %p170 = por %p168, %p169
      %p171 = scmp.ne.s32.totalorder %s163, %s165
      %p172 = scmp.eq.s32.totalorder %s29, 1
      %p173 = por %p171, %p172
      %p174 = scmp.ne.s32.totalorder %s165, %s166
      %p175 = scmp.eq.s32.totalorder %s29, 0
      %p176 = por %p174, %p175
      %p177 = scmp.ne.s32.totalorder %s165, %s166
      %p178 = scmp.eq.s32.totalorder %s30, 1
      %p179 = por %p177, %p178
      %p181 = scmp.ne.s32.totalorder %s166, %s180
      %p182 = scmp.eq.s32.totalorder %s30, 0
      %p183 = por %p181, %p182
      %s185 = sadd.s32 %s184, 1
      %p188 = scmp.eq.s32.totalorder %s24, 1
      %p189 = scmp.ne.s32.totalorder %s184, %s186
      %p190 = scmp.eq.s32.totalorder %s24, 0
      %p191 = por %p189, %p190
      %p192 = scmp.ne.s32.totalorder %s184, %s186
      %p193 = scmp.eq.s32.totalorder %s29, 1
      %p194 = por %p192, %p193
      %p195 = scmp.ne.s32.totalorder %s186, %s187
      %p196 = scmp.eq.s32.totalorder %s29, 0
      %p197 = por %p195, %p196
      %p198 = scmp.ne.s32.totalorder %s186, %s187
      %p199 = scmp.eq.s32.totalorder %s30, 1
      %p200 = por %p198, %p199
      %p202 = scmp.ne.s32.totalorder %s187, %s201
      %p203 = scmp.eq.s32.totalorder %s30, 0
      %p204 = por %p202, %p203
      %s206 = sadd.s32 %s205, 1
      %p209 = scmp.eq.s32.totalorder %s24, 1
      %p210 = scmp.ne.s32.totalorder %s205, %s207
      %p211 = scmp.eq.s32.totalorder %s24, 0
      %p212 = por %p210, %p211
      %p213 = scmp.ne.s32.totalorder %s205, %s207
      %p214 = scmp.eq.s32.totalorder %s29, 1
      %p215 = por %p213, %p214
      %p216 = scmp.ne.s32.totalorder %s207, %s208
      %p217 = scmp.eq.s32.totalorder %s29, 0
      %p218 = por %p216, %p217
      %p219 = scmp.ne.s32.totalorder %s207, %s208
      %p220 = scmp.eq.s32.totalorder %s30, 1
      %p221 = por %p219, %p220
      %p223 = scmp.ne.s32.totalorder %s208, %s222
      %p224 = scmp.eq.s32.totalorder %s30, 0
      %p225 = por %p223, %p224
      %s227 = sadd.s32 %s226, 1
      %p230 = scmp.eq.s32.totalorder %s24, 1
      %p231 = scmp.ne.s32.totalorder %s226, %s228
      %p232 = scmp.eq.s32.totalorder %s24, 0
      %p233 = por %p231, %p232
      %p234 = scmp.ne.s32.totalorder %s226, %s228
      %p235 = scmp.eq.s32.totalorder %s29, 1
      %p236 = por %p234, %p235
      %p237 = scmp.ne.s32.totalorder %s228, %s229
      %p238 = scmp.eq.s32.totalorder %s29, 0
      %p239 = por %p237, %p238
      %p240 = scmp.ne.s32.totalorder %s228, %s229
      %p241 = scmp.eq.s32.totalorder %s30, 1
      %p242 = por %p240, %p241
      %p244 = scmp.ne.s32.totalorder %s229, %s243
      %p245 = scmp.eq.s32.totalorder %s30, 0
      %p246 = por %p244, %p245
      %s248 = sadd.s32 %s247, 1
      %p251 = scmp.eq.s32.totalorder %s24, 1
      %p252 = scmp.ne.s32.totalorder %s247, %s249
      %p253 = scmp.eq.s32.totalorder %s24, 0
      %p254 = por %p252, %p253
      %p255 = scmp.ne.s32.totalorder %s247, %s249
      %p256 = scmp.eq.s32.totalorder %s29, 1
      %p257 = por %p255, %p256
      %p258 = scmp.ne.s32.totalorder %s249, %s250
      %p259 = scmp.eq.s32.totalorder %s29, 0
      %p260 = por %p258, %p259
      %p261 = scmp.ne.s32.totalorder %s249, %s250
      %p262 = scmp.eq.s32.totalorder %s30, 1
      %p263 = por %p261, %p262
      %p265 = scmp.ne.s32.totalorder %s250, %s264
      %p266 = scmp.eq.s32.totalorder %s30, 0
      %p267 = por %p265, %p266
      %s269 = sadd.s32 %s268, 1
      %p272 = scmp.eq.s32.totalorder %s24, 1
      %p273 = scmp.ne.s32.totalorder %s268, %s270
      %p274 = scmp.eq.s32.totalorder %s24, 0
      %p275 = por %p273, %p274
      %p276 = scmp.ne.s32.totalorder %s268, %s270
      %p277 = scmp.eq.s32.totalorder %s29, 1
      %p278 = por %p276, %p277
      %p279 = scmp.ne.s32.totalorder %s270, %s271
      %p280 = scmp.eq.s32.totalorder %s29, 0
      %p281 = por %p279, %p280
      %p282 = scmp.ne.s32.totalorder %s270, %s271
      %p283 = scmp.eq.s32.totalorder %s30, 1
      %p284 = por %p282, %p283
      %p286 = scmp.ne.s32.totalorder %s271, %s285
      %p287 = scmp.eq.s32.totalorder %s30, 0
      %p288 = por %p286, %p287
      %s290 = sadd.s32 %s289, 1
      %p293 = scmp.eq.s32.totalorder %s24, 1
      %p294 = scmp.ne.s32.totalorder %s289, %s291
      %p295 = scmp.eq.s32.totalorder %s24, 0
      %p296 = por %p294, %p295
      %p297 = scmp.ne.s32.totalorder %s289, %s291
      %p298 = scmp.eq.s32.totalorder %s29, 1
      %p299 = por %p297, %p298
      %p300 = scmp.ne.s32.totalorder %s291, %s292
      %p301 = scmp.eq.s32.totalorder %s29, 0
      %p302 = por %p300, %p301
      %p303 = scmp.ne.s32.totalorder %s291, %s292
      %p304 = scmp.eq.s32.totalorder %s30, 1
      %p305 = por %p303, %p304
      %p307 = scmp.ne.s32.totalorder %s292, %s306
      %p308 = scmp.eq.s32.totalorder %s30, 0
      %p309 = por %p307, %p308
      %s310 = ssub.s32 %s24, %s31
      %p311 = scmp.eq.s32.totalorder %s310, 0
      %s313 = sadd.s32 %s312, 1
      %s314 = scalar_select %p311, %s312, %s313
      %p317 = pneg %p311
      %p318 = scmp.eq.s32.totalorder %s24, 1
      %p319 = por %p317, %p318
      %p320 = scmp.ne.s32.totalorder %s312, %s315
      %p321 = scmp.eq.s32.totalorder %s24, 0
      %p322 = por %p320, %p321
      %p323 = scmp.ne.s32.totalorder %s312, %s315
      %p324 = scmp.eq.s32.totalorder %s29, 1
      %p325 = por %p323, %p324
      %p326 = scmp.ne.s32.totalorder %s315, %s316
      %p327 = scmp.eq.s32.totalorder %s29, 0
      %p328 = por %p326, %p327
      %p329 = scmp.ne.s32.totalorder %s315, %s316
      %p330 = scmp.eq.s32.totalorder %s30, 1
      %p331 = por %p329, %p330
      %p333 = scmp.ne.s32.totalorder %s316, %s332
      %p334 = scmp.eq.s32.totalorder %s30, 0
      %p335 = por %p333, %p334
      %p336 = scmp.le.s32.totalorder 1, %s24
      %p337 = scmp.lt.s32.totalorder %s24, 3
      %p338 = pnand %p336, %p337
      %p339 = pneg %p338
      // Predicated region
      $region9: #{tpu_custom_call.1} parent=5 // pred_check
        _
      $region10: #{tpu_custom_call.1} parent=5 // pred_check_branch
        %341 = sbr.rel (%p338) target = $region12
      $region11: #{tpu_custom_call.1} parent=5 // pred_region
        %s342 = ssub.s32 %s24, 1
        // Predicated region
        $region13: #{tpu_custom_call.1} parent=11 // pred_check
          %p343 = pneg %p71
        $region14: #{tpu_custom_call.1} parent=11 // pred_check_branch
          %345 = sbr.rel (%p343) target = $region16
        $region15: #{tpu_custom_call.1} parent=11 // pred_region
          _
        $region16: #{tpu_custom_call.1} parent=11 // pred_fallthru
          _
        // Predicated region
        $region17: #{tpu_custom_call.1} parent=11 // pred_check
          %p346 = pneg %p92
        $region18: #{tpu_custom_call.1} parent=11 // pred_check_branch
          %348 = sbr.rel (%p346) target = $region20
        $region19: #{tpu_custom_call.1} parent=11 // pred_region
          _
        $region20: #{tpu_custom_call.1} parent=11 // pred_fallthru
          _
        // Predicated region
        $region21: #{tpu_custom_call.1} parent=11 // pred_check
          %p349 = pneg %p113
        $region22: #{tpu_custom_call.1} parent=11 // pred_check_branch
          %351 = sbr.rel (%p349) target = $region24
        $region23: #{tpu_custom_call.1} parent=11 // pred_region
          _
        $region24: #{tpu_custom_call.1} parent=11 // pred_fallthru
          _
        // Predicated region
        $region25: #{tpu_custom_call.1} parent=11 // pred_check
          %p352 = pneg %p134
        $region26: #{tpu_custom_call.1} parent=11 // pred_check_branch
          %354 = sbr.rel (%p352) target = $region28
        $region27: #{tpu_custom_call.1} parent=11 // pred_region
          _
        $region28: #{tpu_custom_call.1} parent=11 // pred_fallthru
          _
        // Predicated region
        $region29: #{tpu_custom_call.1} parent=11 // pred_check
          %p355 = pneg %p155
        $region30: #{tpu_custom_call.1} parent=11 // pred_check_branch
          %357 = sbr.rel (%p355) target = $region32
        $region31: #{tpu_custom_call.1} parent=11 // pred_region
          _
        $region32: #{tpu_custom_call.1} parent=11 // pred_fallthru
          _
        // Predicated region
        $region33: #{tpu_custom_call.1} parent=11 // pred_check
          %p358 = pneg %p176
        $region34: #{tpu_custom_call.1} parent=11 // pred_check_branch
          %360 = sbr.rel (%p358) target = $region36
        $region35: #{tpu_custom_call.1} parent=11 // pred_region
          _
        $region36: #{tpu_custom_call.1} parent=11 // pred_fallthru
          _
        // Predicated region
        $region37: #{tpu_custom_call.1} parent=11 // pred_check
          %p361 = pneg %p197
        $region38: #{tpu_custom_call.1} parent=11 // pred_check_branch
          %363 = sbr.rel (%p361) target = $region40
        $region39: #{tpu_custom_call.1} parent=11 // pred_region
          _
        $region40: #{tpu_custom_call.1} parent=11 // pred_fallthru
          _
        // Predicated region
        $region41: #{tpu_custom_call.1} parent=11 // pred_check
          %p364 = pneg %p218
        $region42: #{tpu_custom_call.1} parent=11 // pred_check_branch
          %366 = sbr.rel (%p364) target = $region44
        $region43: #{tpu_custom_call.1} parent=11 // pred_region
          _
        $region44: #{tpu_custom_call.1} parent=11 // pred_fallthru
          _
        // Predicated region
        $region45: #{tpu_custom_call.1} parent=11 // pred_check
          %p367 = pneg %p239
        $region46: #{tpu_custom_call.1} parent=11 // pred_check_branch
          %369 = sbr.rel (%p367) target = $region48
        $region47: #{tpu_custom_call.1} parent=11 // pred_region
          _
        $region48: #{tpu_custom_call.1} parent=11 // pred_fallthru
          _
        // Predicated region
        $region49: #{tpu_custom_call.1} parent=11 // pred_check
          %p370 = pneg %p260
        $region50: #{tpu_custom_call.1} parent=11 // pred_check_branch
          %372 = sbr.rel (%p370) target = $region52
        $region51: #{tpu_custom_call.1} parent=11 // pred_region
          _
        $region52: #{tpu_custom_call.1} parent=11 // pred_fallthru
          _
        // Predicated region
        $region53: #{tpu_custom_call.1} parent=11 // pred_check
          %p373 = pneg %p281
        $region54: #{tpu_custom_call.1} parent=11 // pred_check_branch
          %375 = sbr.rel (%p373) target = $region56
        $region55: #{tpu_custom_call.1} parent=11 // pred_region
          _
        $region56: #{tpu_custom_call.1} parent=11 // pred_fallthru
          _
        // Predicated region
        $region57: #{tpu_custom_call.1} parent=11 // pred_check
          %p376 = pneg %p302
        $region58: #{tpu_custom_call.1} parent=11 // pred_check_branch
          %378 = sbr.rel (%p376) target = $region60
        $region59: #{tpu_custom_call.1} parent=11 // pred_region
          _
        $region60: #{tpu_custom_call.1} parent=11 // pred_fallthru
          _
      $region12: #{tpu_custom_call.1} parent=5 // pred_fallthru
        _
      %p379 = scmp.lt.s32.totalorder %s24, 2
      // Predicated region
      $region61: #{tpu_custom_call.1} parent=5 // pred_check
        %p380 = pneg %p379
      $region62: #{tpu_custom_call.1} parent=5 // pred_check_branch
        %382 = sbr.rel (%p380) target = $region64
      $region63: #{tpu_custom_call.1} parent=5 // pred_region
        // Predicated region
        $region65: #{tpu_custom_call.1} parent=63 // pred_check
          %p383 = pneg %p44
        $region66: #{tpu_custom_call.1} parent=63 // pred_check_branch
          %385 = sbr.rel (%p383) target = $region68
        $region67: #{tpu_custom_call.1} parent=63 // pred_region
          %s386 = sand.u32 %s34, 1
          %s387 = sand.u32 %s34, 1
          %s388 = smul.addr %s387, 32
          %s389 = scalar_lea.vmem [#allocation3], %s388
          %s390 = smul.addr %s24, 4
          %s391 = scalar_lea.vmem %s0, %s390
          // Predicated region
          $region69: #{tpu_custom_call.1} parent=67 // pred_check
            _
          $region70: #{tpu_custom_call.1} parent=67 // pred_check_branch
            %393 = sbr.rel (0) target = $region72
          $region71: #{tpu_custom_call.1} parent=67 // pred_region
            // Predicated region
            $region73: #{tpu_custom_call.1} parent=71 // pred_check
              _
            $region74: #{tpu_custom_call.1} parent=71 // pred_check_branch
              %395 = sbr.rel target = $region76
            $region75: #{tpu_custom_call.1} parent=71 // pred_region
              // Predicated region
              $region88: #{tpu_custom_call.1} parent=75 // pred_check
                _
              $region89: #{tpu_custom_call.1} parent=75 // pred_check_branch
                %424 = sbr.rel (0) target = $region91
              $region90: #{tpu_custom_call.1} parent=75 // pred_region
                loop: start=0, step=1, limit=1
                $region92: #{tpu_custom_call.1} parent=90 // loop_pre_header
                  _
                $region93: #{tpu_custom_call.1} parent=90 // loop_header
                  %s426 = sphi 0, %s430
                  %p427 = scmp.ge.s32.totalorder %s426, 1
                  %s431 = sphi %s391, %s391
                  %s432 = sphi %s389, %s389
                $region94: #{tpu_custom_call.1} parent=90 // loop_header_branch
                  %429 = sbr.rel (%p427) target = $region98
                $region95: #{tpu_custom_call.1} parent=90 // loop_body
                  _
                $region96: #{tpu_custom_call.1} parent=90 // loop_footer
                  %s430 = sadd.s32 1, %s426
                $region97: #{tpu_custom_call.1} parent=90 // loop_footer_branch
                  %425 = sbr.rel target = $region93
                $region98: #{tpu_custom_call.1} parent=90 // loop_exit
                  _
                loop: start=0, step=1, limit=1
                $region99: #{tpu_custom_call.1} parent=90 // loop_pre_header
                  _
                $region100: #{tpu_custom_call.1} parent=90 // loop_header
                  %s435 = sphi 0, %s439
                  %p436 = scmp.ge.s32.totalorder %s435, 1
                  %s440 = sphi %s391, %s391
                  %s441 = sphi %s389, %s389
                $region101: #{tpu_custom_call.1} parent=90 // loop_header_branch
                  %438 = sbr.rel (%p436) target = $region105
                $region102: #{tpu_custom_call.1} parent=90 // loop_body
                  %v442 = vld [vmem:[%s440] sm:$0xf]
                  %443 = vst [vmem:[%s441] sm:$0xf] %v442
                  %v444 = vld [vmem:[%s440 + $0x8] sm:$0xf]
                  %445 = vst [vmem:[%s441 + $0x4] sm:$0xf] %v444
                  %v446 = vld [vmem:[%s440 + $0x10] sm:$0xf]
                  %447 = vst [vmem:[%s441 + $0x8] sm:$0xf] %v446
                  %v448 = vld [vmem:[%s440 + $0x18] sm:$0xf]
                  %449 = vst [vmem:[%s441 + $0xc] sm:$0xf] %v448
                  %v450 = vld [vmem:[%s440 + $0x20] sm:$0xf]
                  %451 = vst [vmem:[%s441 + $0x10] sm:$0xf] %v450
                  %v452 = vld [vmem:[%s440 + $0x28] sm:$0xf]
                  %453 = vst [vmem:[%s441 + $0x14] sm:$0xf] %v452
                  %v454 = vld [vmem:[%s440 + $0x30] sm:$0xf]
                  %455 = vst [vmem:[%s441 + $0x18] sm:$0xf] %v454
                  %v456 = vld [vmem:[%s440 + $0x38] sm:$0xf]
                  %457 = vst [vmem:[%s441 + $0x1c] sm:$0xf] %v456
                $region103: #{tpu_custom_call.1} parent=90 // loop_footer
                  %s439 = sadd.s32 1, %s435
                $region104: #{tpu_custom_call.1} parent=90 // loop_footer_branch
                  %434 = sbr.rel target = $region100
                $region105: #{tpu_custom_call.1} parent=90 // loop_exit
                  _
              $region91: #{tpu_custom_call.1} parent=75 // pred_fallthru
                _
            $region76: #{tpu_custom_call.1} parent=71 // pred_fallthru
              _
            // Predicated region
            $region77: #{tpu_custom_call.1} parent=71 // pred_check
              _
            $region78: #{tpu_custom_call.1} parent=71 // pred_check_branch
              %397 = sbr.rel (0) target = $region80
            $region79: #{tpu_custom_call.1} parent=71 // pred_region
              loop: start=0, step=1, limit=1
              $region81: #{tpu_custom_call.1} parent=79 // loop_pre_header
                _
              $region82: #{tpu_custom_call.1} parent=79 // loop_header
                %s400 = sphi 0, %s404
                %p401 = scmp.ge.s32.totalorder %s400, 1
                %s405 = sphi %s391, %s391
                %s406 = sphi %s389, %s389
              $region83: #{tpu_custom_call.1} parent=79 // loop_header_branch
                %403 = sbr.rel (%p401) target = $region87
              $region84: #{tpu_custom_call.1} parent=79 // loop_body
                %v407 = vld [vmem:[%s405] sm:$0xf]
                %408 = vst [vmem:[%s406] sm:$0xf] %v407
                %v409 = vld [vmem:[%s405 + $0x8] sm:$0xf]
                %410 = vst [vmem:[%s406 + $0x4] sm:$0xf] %v409
                %v411 = vld [vmem:[%s405 + $0x10] sm:$0xf]
                %412 = vst [vmem:[%s406 + $0x8] sm:$0xf] %v411
                %v413 = vld [vmem:[%s405 + $0x18] sm:$0xf]
                %414 = vst [vmem:[%s406 + $0xc] sm:$0xf] %v413
                %v415 = vld [vmem:[%s405 + $0x20] sm:$0xf]
                %416 = vst [vmem:[%s406 + $0x10] sm:$0xf] %v415
                %v417 = vld [vmem:[%s405 + $0x28] sm:$0xf]
                %418 = vst [vmem:[%s406 + $0x14] sm:$0xf] %v417
                %v419 = vld [vmem:[%s405 + $0x30] sm:$0xf]
                %420 = vst [vmem:[%s406 + $0x18] sm:$0xf] %v419
                %v421 = vld [vmem:[%s405 + $0x38] sm:$0xf]
                %422 = vst [vmem:[%s406 + $0x1c] sm:$0xf] %v421
              $region85: #{tpu_custom_call.1} parent=79 // loop_footer
                %s404 = sadd.s32 1, %s400
              $region86: #{tpu_custom_call.1} parent=79 // loop_footer_branch
                %399 = sbr.rel target = $region82
              $region87: #{tpu_custom_call.1} parent=79 // loop_exit
                _
            $region80: #{tpu_custom_call.1} parent=71 // pred_fallthru
              _
          $region72: #{tpu_custom_call.1} parent=67 // pred_fallthru
            _
          %458 = vnop
        $region68: #{tpu_custom_call.1} parent=63 // pred_fallthru
          _
      $region64: #{tpu_custom_call.1} parent=5 // pred_fallthru
        _
      %p459 = scmp.le.s32.totalorder 1, %s24
      %p460 = scmp.lt.s32.totalorder %s24, 3
      %p461 = pnand %p459, %p460
      %p462 = pneg %p461
      // Predicated region
      $region106: #{tpu_custom_call.1} parent=5 // pred_check
        _
      $region107: #{tpu_custom_call.1} parent=5 // pred_check_branch
        %464 = sbr.rel (%p461) target = $region109
      $region108: #{tpu_custom_call.1} parent=5 // pred_region
        %s465 = ssub.s32 %s24, 1
        %s466 = sand.u32 %s37, 1
        %s467 = sand.u32 %s37, 1
        %s468 = smul.addr %s467, 32
        %s469 = scalar_lea.vmem [#allocation3], %s468
        // Predicated region
        $region110: #{tpu_custom_call.1} parent=108 // pred_check
          %p470 = pneg %p50
        $region111: #{tpu_custom_call.1} parent=108 // pred_check_branch
          %472 = sbr.rel (%p470) target = $region113
        $region112: #{tpu_custom_call.1} parent=108 // pred_region
          _
        $region113: #{tpu_custom_call.1} parent=108 // pred_fallthru
          _
        %s473 = sand.u32 %s37, 1
        %s474 = sand.u32 %s37, 1
        %s475 = smul.addr %s474, 32
        %s476 = scalar_lea.vmem [#allocation3], %s475
        %p477 = pneg %p50
        %p478 = pneg %p47
        %p479 = pneg %p71
        %p480 = pneg %p68
        %p481 = pneg %p92
        %p482 = pneg %p89
        %p483 = pneg %p113
        %p484 = pneg %p110
        %p485 = pneg %p134
        %p486 = pneg %p131
        %p487 = pneg %p155
        %p488 = pneg %p152
        %p489 = pneg %p176
        %p490 = pneg %p173
        %p491 = pneg %p197
        %p492 = pneg %p194
        %p493 = pneg %p218
        %p494 = pneg %p215
        %p495 = pneg %p239
        %p496 = pneg %p236
        %p497 = pneg %p260
        %p498 = pneg %p257
        %p499 = pneg %p281
        %p500 = pneg %p278
        %p501 = pneg %p302
        %p502 = pneg %p299
        %p503 = pneg %p328
        %p504 = pneg %p325
        %s505 = sand.u32 %s315, 1
        %s506 = scalar_lea.sflag [#allocation5], %s505
        %s507 = sand.u32 %s315, 1
        %s508 = scalar_lea.vmem [#allocation4], %s507
        %v510 = vld [vmem:[%s469] sm:$0xf]
        %v511 = vld [vmem:[%s469 + $0x4] sm:$0xf]
        %v512 = vld [vmem:[%s469 + $0x8] sm:$0xf]
        %v513 = vld [vmem:[%s469 + $0xc] sm:$0xf]
        %v514 = vld [vmem:[%s469 + $0x10] sm:$0xf]
        %v515 = vld [vmem:[%s469 + $0x14] sm:$0xf]
        %v516 = vld [vmem:[%s469 + $0x18] sm:$0xf]
        %v517 = vld [vmem:[%s469 + $0x1c] sm:$0xf]
        %v518 = vld [vmem:[%s1] sm:$0xf]
        %v519 = vld [vmem:[%s1 + $0x4] sm:$0xf]
        %v520 = vld [vmem:[%s1 + $0x8] sm:$0xf]
        %v521 = vld [vmem:[%s1 + $0xc] sm:$0xf]
        %v522 = vld [vmem:[%s1 + $0x10] sm:$0xf]
        %v523 = vld [vmem:[%s1 + $0x14] sm:$0xf]
        %v524 = vld [vmem:[%s1 + $0x18] sm:$0x1]
        %v525 = vld [vmem:[%s2] sm:$0xff]
        %v526 = vld [vmem:[%s2 + $0x8] sm:$0xff]
        %v527 = vld [vmem:[%s2 + $0x10] sm:$0xff]
        %v528 = vld [vmem:[%s2 + $0x18] sm:$0xff]
        %v529 = vld [vmem:[%s2 + $0x20] sm:$0xff]
        %v530 = vld [vmem:[%s2 + $0x28] sm:$0xff]
        %v531 = vld [vmem:[%s2 + $0x30] sm:$0x1]
        %533 = vset.pattern.permute.xlu0 0
        %534 = vperm.xlu0 %533, %v525
        %v535 = vpop.permute.xlu0 %534
        %538 = vset.pattern.permute.xlu0 0
        %539 = vperm.xlu0 %538, %v526
        %v540 = vpop.permute.xlu0 %539
        %543 = vset.pattern.permute.xlu0 0
        %544 = vperm.xlu0 %543, %v527
        %v545 = vpop.permute.xlu0 %544
        %548 = vset.pattern.permute.xlu0 0
        %549 = vperm.xlu0 %548, %v528
        %v550 = vpop.permute.xlu0 %549
        %553 = vset.pattern.permute.xlu0 0
        %554 = vperm.xlu0 %553, %v529
        %v555 = vpop.permute.xlu0 %554
        %558 = vset.pattern.permute.xlu0 0
        %559 = vperm.xlu0 %558, %v530
        %v560 = vpop.permute.xlu0 %559
        %563 = vset.pattern.permute.xlu0 0
        %564 = vperm.xlu0 %563, %v531
        %v565 = vpop.permute.xlu0 %564
        %v574 = vunpack.c.l.b16 %v518
        %v575 = vunpack.c.l.b16 %v519
        %v576 = vunpack.c.l.b16 %v520
        %v577 = vunpack.c.l.b16 %v521
        %v578 = vunpack.c.l.b16 %v522
        %v579 = vunpack.c.l.b16 %v523
        %v580 = vunpack.c.l.b16 %v524
        %v581 = vpack.c.b16 %v575, %v574
        %v582 = vpack.c.b16 %v577, %v576
        %v583 = vpack.c.b16 %v579, %v578
        %v584 = vpack.c.b16 %v580, %v580
        %v593 = vunpack.c.l.b16 %v510
        %v594 = vunpack.c.l.b16 %v511
        %v595 = vunpack.c.l.b16 %v512
        %v596 = vunpack.c.l.b16 %v513
        %v597 = vunpack.c.l.b16 %v514
        %v598 = vunpack.c.l.b16 %v515
        %v599 = vunpack.c.l.b16 %v516
        %v600 = vunpack.c.l.b16 %v517
        %v601 = vpack.c.b16 %v594, %v593
        %v602 = vpack.c.b16 %v596, %v595
        %v603 = vpack.c.b16 %v598, %v597
        %v604 = vpack.c.b16 %v600, %v599
        %vm609 = vcmask 523264
        %v611 = vsel %vm609, %v581, 0
        %v614 = vsel %vm609, %v582, 0
        %v617 = vsel %vm609, %v583, 0
        %v620 = vsel %vm609, %v584, 0
        %622 = vmatprep.subr.bf16.mxu0 0
        %623 = vmatpush1.bf16.msra.mxu0 %v601
        %624 = vmatprep.subr.bf16.mxu0 0
        %625 = vmatpush1.bf16.msra.mxu0 %v602
        %626 = vmatprep.subr.bf16.mxu0 0
        %627 = vmatpush1.bf16.msra.mxu0 %v603
        %628 = vmatprep.subr.bf16.mxu0 0
        %629 = vmatpush1.bf16.msra.mxu0 %v604
        %630 = vmatprep.subr.bf16.mxu0 0
        %631 = vmatpush1.bf16.msra.mxu0 0
        %632 = vmatprep.subr.bf16.mxu0 0
        %633 = vmatpush1.bf16.msra.mxu0 0
        %634 = vmatprep.subr.bf16.mxu0 0
        %635 = vmatpush1.bf16.msra.mxu0 0
        %636 = vmatprep.subr.bf16.mxu0 0
        %637 = vmatpush1.bf16.msra.mxu0 0
        %638 = vmatprep.subr.bf16.mxu0 0
        %639 = vmatpush1.bf16.msra.mxu0 0
        %640 = vmatprep.subr.bf16.mxu0 0
        %641 = vmatpush1.bf16.msra.mxu0 0
        %642 = vmatprep.subr.bf16.mxu0 0
        %643 = vmatpush1.bf16.msra.mxu0 0
        %644 = vmatprep.subr.bf16.mxu0 0
        %645 = vmatpush1.bf16.msra.mxu0 0
        %646 = vmatprep.subr.bf16.mxu0 0
        %647 = vmatpush1.bf16.msra.mxu0 0
        %648 = vmatprep.subr.bf16.mxu0 0
        %649 = vmatpush1.bf16.msra.mxu0 0
        %650 = vmatprep.subr.bf16.mxu0 0
        %651 = vmatpush1.bf16.msra.mxu0 0
        %652 = vmatprep.subr.bf16.mxu0 0
        %653 = vmatpush1.bf16.msra.mxu0 0
        %654 = vmatprep.mubr.bf16.mxu0 0
        %655 = vmatmul.mubr.bf16.gmra.mrb[0].mxu0 %v611
        %v656 = vpop.f32.mrb[0].mxu0
        %v657 = vadd.f32 %v535, %v656
        %v658 = vpop.f32.mrb[0].mxu0
        %v659 = vpop.f32.mrb[0].mxu0
        %v660 = vadd.f32 %v540, %v659
        %v661 = vpop.f32.mrb[0].mxu0
        %662 = vmatprep.mubr.bf16.mxu0 0
        %663 = vmatmul.mubr.bf16.gmra.mrb[0].mxu0 %v614
        %v664 = vpop.f32.mrb[0].mxu0
        %v665 = vadd.f32 %v545, %v664
        %v666 = vpop.f32.mrb[0].mxu0
        %v667 = vpop.f32.mrb[0].mxu0
        %v668 = vadd.f32 %v550, %v667
        %v669 = vpop.f32.mrb[0].mxu0
        %670 = vmatprep.mubr.bf16.mxu0 0
        %671 = vmatmul.mubr.bf16.gmra.mrb[0].mxu0 %v617
        %v672 = vpop.f32.mrb[0].mxu0
        %v673 = vadd.f32 %v555, %v672
        %v674 = vpop.f32.mrb[0].mxu0
        %v675 = vpop.f32.mrb[0].mxu0
        %v676 = vadd.f32 %v560, %v675
        %v677 = vpop.f32.mrb[0].mxu0
        %678 = vmatprep.mubr.bf16.mxu0 0
        %679 = vmatmul.mubr.bf16.gmra.mrb[0].mxu0 %v620
        %v680 = vpop.f32.mrb[0].mxu0
        %v681 = vadd.f32 %v565, %v680
        %v682 = vpop.f32.mrb[0].mxu0
        %v683 = vpop.f32.mrb[0].mxu0
        %v684 = vpop.f32.mrb[0].mxu0
        %685 = vdwg.mxu0
        %v686 = vmax.f32 %v657, 0.0
        %v687 = vmax.f32 %v660, 0.0
        %v688 = vmax.f32 %v665, 0.0
        %v689 = vmax.f32 %v668, 0.0
        %v690 = vmax.f32 %v673, 0.0
        %v691 = vmax.f32 %v676, 0.0
        %v692 = vmax.f32 %v681, 0.0
        %v693 = vpack.c.bf16 %v687, %v686
        %v694 = vpack.c.bf16 %v689, %v688
        %v695 = vpack.c.bf16 %v691, %v690
        %v696 = vpack.c.bf16 %v692, %v692
        %v697 = vld [vmem:[%s3] sm:$0xf]
        %v698 = vld [vmem:[%s3 + $0x4] sm:$0xf]
        %v699 = vld [vmem:[%s3 + $0x8] sm:$0xf]
        %v700 = vld [vmem:[%s3 + $0xc] sm:$0xf]
        %v701 = vld [vmem:[%s3 + $0x10] sm:$0xf]
        %v702 = vld [vmem:[%s3 + $0x14] sm:$0xf]
        %v703 = vld [vmem:[%s3 + $0x18] sm:$0x1]
        %v704 = vld [vmem:[%s4] sm:$0xff]
        %v705 = vld [vmem:[%s4 + $0x8] sm:$0xff]
        %v706 = vld [vmem:[%s4 + $0x10] sm:$0xff]
        %v707 = vld [vmem:[%s4 + $0x18] sm:$0xff]
        %v708 = vld [vmem:[%s4 + $0x20] sm:$0xff]
        %v709 = vld [vmem:[%s4 + $0x28] sm:$0xff]
        %v710 = vld [vmem:[%s4 + $0x30] sm:$0x1]
        %712 = vset.pattern.permute.xlu0 0
        %713 = vperm.xlu0 %712, %v704
        %v714 = vpop.permute.xlu0 %713
        %717 = vset.pattern.permute.xlu0 0
        %718 = vperm.xlu0 %717, %v705
        %v719 = vpop.permute.xlu0 %718
        %722 = vset.pattern.permute.xlu0 0
        %723 = vperm.xlu0 %722, %v706
        %v724 = vpop.permute.xlu0 %723
        %727 = vset.pattern.permute.xlu0 0
        %728 = vperm.xlu0 %727, %v707
        %v729 = vpop.permute.xlu0 %728
        %732 = vset.pattern.permute.xlu0 0
        %733 = vperm.xlu0 %732, %v708
        %v734 = vpop.permute.xlu0 %733
        %737 = vset.pattern.permute.xlu0 0
        %738 = vperm.xlu0 %737, %v709
        %v739 = vpop.permute.xlu0 %738
        %742 = vset.pattern.permute.xlu0 0
        %743 = vperm.xlu0 %742, %v710
        %v744 = vpop.permute.xlu0 %743
        %v753 = vunpack.c.l.b16 %v697
        %v754 = vunpack.c.l.b16 %v698
        %v755 = vunpack.c.l.b16 %v699
        %v756 = vunpack.c.l.b16 %v700
        %v757 = vunpack.c.l.b16 %v701
        %v758 = vunpack.c.l.b16 %v702
        %v759 = vunpack.c.l.b16 %v703
        %v760 = vpack.c.b16 %v754, %v753
        %v761 = vpack.c.b16 %v756, %v755
        %v762 = vpack.c.b16 %v758, %v757
        %v763 = vpack.c.b16 %v759, %v759
        %vm764 = vcmask 400384
        %v766 = vsel %vm764, %v760, 0
        %v769 = vsel %vm764, %v761, 0
        %v772 = vsel %vm764, %v762, 0
        %v775 = vsel %vm764, %v763, 0
        %vm777 = vcmask 1040384
        %v778 = vsel 0, 4294967295, 65535
        %v779 = vsel %vm777, %v778, 0
        %v781 = vand.u32 %v696, %v779
        %783 = vmatprep.subr.bf16.mxu0 0
        %784 = vmatpush1.bf16.msra.mxu0 %v693
        %785 = vmatprep.subr.bf16.mxu0 0
        %786 = vmatpush1.bf16.msra.mxu0 %v694
        %787 = vmatprep.subr.bf16.mxu0 0
        %788 = vmatpush1.bf16.msra.mxu0 %v695
        %789 = vmatprep.subr.bf16.mxu0 0
        %790 = vmatpush1.bf16.msra.mxu0 %v781
        %791 = vmatprep.subr.bf16.mxu0 0
        %792 = vmatpush1.bf16.msra.mxu0 0
        %793 = vmatprep.subr.bf16.mxu0 0
        %794 = vmatpush1.bf16.msra.mxu0 0
        %795 = vmatprep.subr.bf16.mxu0 0
        %796 = vmatpush1.bf16.msra.mxu0 0
        %797 = vmatprep.subr.bf16.mxu0 0
        %798 = vmatpush1.bf16.msra.mxu0 0
        %799 = vmatprep.subr.bf16.mxu0 0
        %800 = vmatpush1.bf16.msra.mxu0 0
        %801 = vmatprep.subr.bf16.mxu0 0
        %802 = vmatpush1.bf16.msra.mxu0 0
        %803 = vmatprep.subr.bf16.mxu0 0
        %804 = vmatpush1.bf16.msra.mxu0 0
        %805 = vmatprep.subr.bf16.mxu0 0
        %806 = vmatpush1.bf16.msra.mxu0 0
        %807 = vmatprep.subr.bf16.mxu0 0
        %808 = vmatpush1.bf16.msra.mxu0 0
        %809 = vmatprep.subr.bf16.mxu0 0
        %810 = vmatpush1.bf16.msra.mxu0 0
        %811 = vmatprep.subr.bf16.mxu0 0
        %812 = vmatpush1.bf16.msra.mxu0 0
        %813 = vmatprep.subr.bf16.mxu0 0
        %814 = vmatpush1.bf16.msra.mxu0 0
        %815 = vmatprep.mubr.bf16.mxu0 0
        %816 = vmatmul.mubr.bf16.gmra.mrb[0].mxu0 %v766
        %v817 = vpop.f32.mrb[0].mxu0
        %v818 = vadd.f32 %v714, %v817
        %v819 = vpop.f32.mrb[0].mxu0
        %v820 = vpop.f32.mrb[0].mxu0
        %v821 = vadd.f32 %v719, %v820
        %v822 = vpop.f32.mrb[0].mxu0
        %823 = vmatprep.mubr.bf16.mxu0 0
        %824 = vmatmul.mubr.bf16.gmra.mrb[0].mxu0 %v769
        %v825 = vpop.f32.mrb[0].mxu0
        %v826 = vadd.f32 %v724, %v825
        %v827 = vpop.f32.mrb[0].mxu0
        %v828 = vpop.f32.mrb[0].mxu0
        %v829 = vadd.f32 %v729, %v828
        %v830 = vpop.f32.mrb[0].mxu0
        %831 = vmatprep.mubr.bf16.mxu0 0
        %832 = vmatmul.mubr.bf16.gmra.mrb[0].mxu0 %v772
        %v833 = vpop.f32.mrb[0].mxu0
        %v834 = vadd.f32 %v734, %v833
        %v835 = vpop.f32.mrb[0].mxu0
        %v836 = vpop.f32.mrb[0].mxu0
        %v837 = vadd.f32 %v739, %v836
        %v838 = vpop.f32.mrb[0].mxu0
        %839 = vmatprep.mubr.bf16.mxu0 0
        %840 = vmatmul.mubr.bf16.gmra.mrb[0].mxu0 %v775
        %v841 = vpop.f32.mrb[0].mxu0
        %v842 = vadd.f32 %v744, %v841
        %v843 = vpop.f32.mrb[0].mxu0
        %v844 = vpop.f32.mrb[0].mxu0
        %v845 = vpop.f32.mrb[0].mxu0
        %846 = vdwg.mxu0
        %v847 = vmax.f32 %v818, 0.0
        %v848 = vmax.f32 %v821, 0.0
        %v849 = vmax.f32 %v826, 0.0
        %v850 = vmax.f32 %v829, 0.0
        %v851 = vmax.f32 %v834, 0.0
        %v852 = vmax.f32 %v837, 0.0
        %v853 = vmax.f32 %v842, 0.0
        %v854 = vpack.c.bf16 %v848, %v847
        %v855 = vpack.c.bf16 %v850, %v849
        %v856 = vpack.c.bf16 %v852, %v851
        %v857 = vpack.c.bf16 %v853, %v853
        %v858 = vld [vmem:[%s5] sm:$0xf]
        %v859 = vld [vmem:[%s5 + $0x4] sm:$0xf]
        %v860 = vld [vmem:[%s5 + $0x8] sm:$0xf]
        %v861 = vld [vmem:[%s5 + $0xc] sm:$0xf]
        %v862 = vld [vmem:[%s5 + $0x10] sm:$0x3]
        %v863 = vld [vmem:[%s6] sm:$0xff]
        %v864 = vld [vmem:[%s6 + $0x8] sm:$0xff]
        %v865 = vld [vmem:[%s6 + $0x10] sm:$0xff]
        %v866 = vld [vmem:[%s6 + $0x18] sm:$0xff]
        %v867 = vld [vmem:[%s6 + $0x20] sm:$0xf]
        %869 = vset.pattern.permute.xlu0 0
        %870 = vperm.xlu0 %869, %v863
        %v871 = vpop.permute.xlu0 %870
        %874 = vset.pattern.permute.xlu0 0
        %875 = vperm.xlu0 %874, %v864
        %v876 = vpop.permute.xlu0 %875
        %879 = vset.pattern.permute.xlu0 0
        %880 = vperm.xlu0 %879, %v865
        %v881 = vpop.permute.xlu0 %880
        %884 = vset.pattern.permute.xlu0 0
        %885 = vperm.xlu0 %884, %v866
        %v886 = vpop.permute.xlu0 %885
        %889 = vset.pattern.permute.xlu0 0
        %890 = vperm.xlu0 %889, %v867
        %v891 = vpop.permute.xlu0 %890
        %v898 = vunpack.c.l.b16 %v858
        %v899 = vunpack.c.l.b16 %v859
        %v900 = vunpack.c.l.b16 %v860
        %v901 = vunpack.c.l.b16 %v861
        %v902 = vunpack.c.l.b16 %v862
        %v903 = vpack.c.b16 %v899, %v898
        %v904 = vpack.c.b16 %v901, %v900
        %v905 = vpack.c.b16 %v902, %v902
        %v907 = vsel %vm764, %v903, 0
        %v910 = vsel %vm764, %v904, 0
        %v913 = vsel %vm764, %v905, 0
        %v916 = vand.u32 %v857, %v779
        %918 = vmatprep.subr.bf16.mxu0 0
        %919 = vmatpush1.bf16.msra.mxu0 %v854
        %920 = vmatprep.subr.bf16.mxu0 0
        %921 = vmatpush1.bf16.msra.mxu0 %v855
        %922 = vmatprep.subr.bf16.mxu0 0
        %923 = vmatpush1.bf16.msra.mxu0 %v856
        %924 = vmatprep.subr.bf16.mxu0 0
        %925 = vmatpush1.bf16.msra.mxu0 %v916
        %926 = vmatprep.subr.bf16.mxu0 0
        %927 = vmatpush1.bf16.msra.mxu0 0
        %928 = vmatprep.subr.bf16.mxu0 0
        %929 = vmatpush1.bf16.msra.mxu0 0
        %930 = vmatprep.subr.bf16.mxu0 0
        %931 = vmatpush1.bf16.msra.mxu0 0
        %932 = vmatprep.subr.bf16.mxu0 0
        %933 = vmatpush1.bf16.msra.mxu0 0
        %934 = vmatprep.subr.bf16.mxu0 0
        %935 = vmatpush1.bf16.msra.mxu0 0
        %936 = vmatprep.subr.bf16.mxu0 0
        %937 = vmatpush1.bf16.msra.mxu0 0
        %938 = vmatprep.subr.bf16.mxu0 0
        %939 = vmatpush1.bf16.msra.mxu0 0
        %940 = vmatprep.subr.bf16.mxu0 0
        %941 = vmatpush1.bf16.msra.mxu0 0
        %942 = vmatprep.subr.bf16.mxu0 0
        %943 = vmatpush1.bf16.msra.mxu0 0
        %944 = vmatprep.subr.bf16.mxu0 0
        %945 = vmatpush1.bf16.msra.mxu0 0
        %946 = vmatprep.subr.bf16.mxu0 0
        %947 = vmatpush1.bf16.msra.mxu0 0
        %948 = vmatprep.subr.bf16.mxu0 0
        %949 = vmatpush1.bf16.msra.mxu0 0
        %950 = vmatprep.mubr.bf16.mxu0 0
        %951 = vmatmul.mubr.bf16.gmra.mrb[0].mxu0 %v907
        %v952 = vpop.f32.mrb[0].mxu0
        %v953 = vadd.f32 %v871, %v952
        %v954 = vpop.f32.mrb[0].mxu0
        %v955 = vpop.f32.mrb[0].mxu0
        %v956 = vadd.f32 %v876, %v955
        %v957 = vpop.f32.mrb[0].mxu0
        %958 = vmatprep.mubr.bf16.mxu0 0
        %959 = vmatmul.mubr.bf16.gmra.mrb[0].mxu0 %v910
        %v960 = vpop.f32.mrb[0].mxu0
        %v961 = vadd.f32 %v881, %v960
        %v962 = vpop.f32.mrb[0].mxu0
        %v963 = vpop.f32.mrb[0].mxu0
        %v964 = vadd.f32 %v886, %v963
        %v965 = vpop.f32.mrb[0].mxu0
        %966 = vmatprep.mubr.bf16.mxu0 0
        %967 = vmatmul.mubr.bf16.gmra.mrb[0].mxu0 %v913
        %v968 = vpop.f32.mrb[0].mxu0
        %v969 = vadd.f32 %v891, %v968
        %v970 = vpop.f32.mrb[0].mxu0
        %v971 = vpop.f32.mrb[0].mxu0
        %v972 = vpop.f32.mrb[0].mxu0
        %973 = vdwg.mxu0
        %v974 = vmax.f32 %v953, 0.0
        %v975 = vmax.f32 %v956, 0.0
        %v976 = vmax.f32 %v961, 0.0
        %v977 = vmax.f32 %v964, 0.0
        %v978 = vmax.f32 %v969, 0.0
        %v979 = vpack.c.bf16 %v975, %v974
        %v980 = vpack.c.bf16 %v977, %v976
        %v981 = vpack.c.bf16 %v978, %v978
        %v982 = vld [vmem:[%s7] sm:$0xf]
        %v983 = vld [vmem:[%s7 + $0x4] sm:$0xf]
        %v984 = vld [vmem:[%s7 + $0x8] sm:$0xf]
        %v985 = vld [vmem:[%s7 + $0xc] sm:$0x1]
        %v986 = vld [vmem:[%s8] sm:$0xff]
        %v987 = vld [vmem:[%s8 + $0x8] sm:$0xff]
        %v988 = vld [vmem:[%s8 + $0x10] sm:$0xff]
        %v989 = vld [vmem:[%s8 + $0x18] sm:$0x1]
        %991 = vset.pattern.permute.xlu0 0
        %992 = vperm.xlu0 %991, %v986
        %v993 = vpop.permute.xlu0 %992
        %996 = vset.pattern.permute.xlu0 0
        %997 = vperm.xlu0 %996, %v987
        %v998 = vpop.permute.xlu0 %997
        %1001 = vset.pattern.permute.xlu0 0
        %1002 = vperm.xlu0 %1001, %v988
        %v1003 = vpop.permute.xlu0 %1002
        %1006 = vset.pattern.permute.xlu0 0
        %1007 = vperm.xlu0 %1006, %v989
        %v1008 = vpop.permute.xlu0 %1007
        %v1014 = vunpack.c.l.b16 %v982
        %v1015 = vunpack.c.l.b16 %v983
        %v1016 = vunpack.c.l.b16 %v984
        %v1017 = vunpack.c.l.b16 %v985
        %v1018 = vpack.c.b16 %v1015, %v1014
        %v1019 = vpack.c.b16 %v1017, %v1016
        %vm1020 = vcmask 293888
        %v1022 = vsel %vm1020, %v1018, 0
        %v1025 = vsel %vm1020, %v1019, 0
        %vm1027 = vcmask 1041408
        %v1029 = vsel %vm1027, %v981, 0
        %1031 = vmatprep.subr.bf16.mxu0 0
        %1032 = vmatpush1.bf16.msra.mxu0 %v979
        %1033 = vmatprep.subr.bf16.mxu0 0
        %1034 = vmatpush1.bf16.msra.mxu0 %v980
        %1035 = vmatprep.subr.bf16.mxu0 0
        %1036 = vmatpush1.bf16.msra.mxu0 %v1029
        %1037 = vmatprep.subr.bf16.mxu0 0
        %1038 = vmatpush1.bf16.msra.mxu0 0
        %1039 = vmatprep.subr.bf16.mxu0 0
        %1040 = vmatpush1.bf16.msra.mxu0 0
        %1041 = vmatprep.subr.bf16.mxu0 0
        %1042 = vmatpush1.bf16.msra.mxu0 0
        %1043 = vmatprep.subr.bf16.mxu0 0
        %1044 = vmatpush1.bf16.msra.mxu0 0
        %1045 = vmatprep.subr.bf16.mxu0 0
        %1046 = vmatpush1.bf16.msra.mxu0 0
        %1047 = vmatprep.subr.bf16.mxu0 0
        %1048 = vmatpush1.bf16.msra.mxu0 0
        %1049 = vmatprep.subr.bf16.mxu0 0
        %1050 = vmatpush1.bf16.msra.mxu0 0
        %1051 = vmatprep.subr.bf16.mxu0 0
        %1052 = vmatpush1.bf16.msra.mxu0 0
        %1053 = vmatprep.subr.bf16.mxu0 0
        %1054 = vmatpush1.bf16.msra.mxu0 0
        %1055 = vmatprep.subr.bf16.mxu0 0
        %1056 = vmatpush1.bf16.msra.mxu0 0
        %1057 = vmatprep.subr.bf16.mxu0 0
        %1058 = vmatpush1.bf16.msra.mxu0 0
        %1059 = vmatprep.subr.bf16.mxu0 0
        %1060 = vmatpush1.bf16.msra.mxu0 0
        %1061 = vmatprep.subr.bf16.mxu0 0
        %1062 = vmatpush1.bf16.msra.mxu0 0
        %1063 = vmatprep.mubr.bf16.mxu0 0
        %1064 = vmatmul.mubr.bf16.gmra.mrb[0].mxu0 %v1022
        %v1065 = vpop.f32.mrb[0].mxu0
        %v1066 = vadd.f32 %v993, %v1065
        %v1067 = vpop.f32.mrb[0].mxu0
        %v1068 = vpop.f32.mrb[0].mxu0
        %v1069 = vadd.f32 %v998, %v1068
        %v1070 = vpop.f32.mrb[0].mxu0
        %1071 = vmatprep.mubr.bf16.mxu0 0
        %1072 = vmatmul.mubr.bf16.gmra.mrb[0].mxu0 %v1025
        %v1073 = vpop.f32.mrb[0].mxu0
        %v1074 = vadd.f32 %v1003, %v1073
        %v1075 = vpop.f32.mrb[0].mxu0
        %v1076 = vpop.f32.mrb[0].mxu0
        %v1077 = vadd.f32 %v1008, %v1076
        %v1078 = vpop.f32.mrb[0].mxu0
        %1079 = vdwg.mxu0
        %v1080 = vmax.f32 %v1066, 0.0
        %v1081 = vmax.f32 %v1069, 0.0
        %v1082 = vmax.f32 %v1074, 0.0
        %v1083 = vmax.f32 %v1077, 0.0
        %v1084 = vpack.c.bf16 %v1081, %v1080
        %v1085 = vpack.c.bf16 %v1083, %v1082
        %v1086 = vld [vmem:[%s9] sm:$0xf]
        %v1087 = vld [vmem:[%s9 + $0x4] sm:$0xf]
        %v1088 = vld [vmem:[%s10] sm:$0xff]
        %v1089 = vld [vmem:[%s10 + $0x8] sm:$0xff]
        %1091 = vset.pattern.permute.xlu0 0
        %1092 = vperm.xlu0 %1091, %v1088
        %v1093 = vpop.permute.xlu0 %1092
        %1096 = vset.pattern.permute.xlu0 0
        %1097 = vperm.xlu0 %1096, %v1089
        %v1098 = vpop.permute.xlu0 %1097
        %v1102 = vunpack.c.l.b16 %v1086
        %v1103 = vunpack.c.l.b16 %v1087
        %v1104 = vpack.c.b16 %v1103, %v1102
        %vm1105 = vcmask 203776
        %v1107 = vsel %vm1105, %v1104, 0
        %vm1109 = vcmask 1043456
        %vm1110 = vcmask 1044480
        %v1111 = vsel %vm1109, 4294967295, 65535
        %v1112 = vsel %vm1110, %v1111, 0
        %v1114 = vand.u32 %v1085, %v1112
        %1116 = vmatprep.subr.bf16.mxu0 0
        %1117 = vmatpush1.bf16.msra.mxu0 %v1084
        %1118 = vmatprep.subr.bf16.mxu0 0
        %1119 = vmatpush1.bf16.msra.mxu0 %v1114
        %1120 = vmatprep.subr.bf16.mxu0 0
        %1121 = vmatpush1.bf16.msra.mxu0 0
        %1122 = vmatprep.subr.bf16.mxu0 0
        %1123 = vmatpush1.bf16.msra.mxu0 0
        %1124 = vmatprep.subr.bf16.mxu0 0
        %1125 = vmatpush1.bf16.msra.mxu0 0
        %1126 = vmatprep.subr.bf16.mxu0 0
        %1127 = vmatpush1.bf16.msra.mxu0 0
        %1128 = vmatprep.subr.bf16.mxu0 0
        %1129 = vmatpush1.bf16.msra.mxu0 0
        %1130 = vmatprep.subr.bf16.mxu0 0
        %1131 = vmatpush1.bf16.msra.mxu0 0
        %1132 = vmatprep.subr.bf16.mxu0 0
        %1133 = vmatpush1.bf16.msra.mxu0 0
        %1134 = vmatprep.subr.bf16.mxu0 0
        %1135 = vmatpush1.bf16.msra.mxu0 0
        %1136 = vmatprep.subr.bf16.mxu0 0
        %1137 = vmatpush1.bf16.msra.mxu0 0
        %1138 = vmatprep.subr.bf16.mxu0 0
        %1139 = vmatpush1.bf16.msra.mxu0 0
        %1140 = vmatprep.subr.bf16.mxu0 0
        %1141 = vmatpush1.bf16.msra.mxu0 0
        %1142 = vmatprep.subr.bf16.mxu0 0
        %1143 = vmatpush1.bf16.msra.mxu0 0
        %1144 = vmatprep.subr.bf16.mxu0 0
        %1145 = vmatpush1.bf16.msra.mxu0 0
        %1146 = vmatprep.subr.bf16.mxu0 0
        %1147 = vmatpush1.bf16.msra.mxu0 0
        %1148 = vmatprep.mubr.bf16.mxu0 0
        %1149 = vmatmul.mubr.bf16.gmra.mrb[0].mxu0 %v1107
        %v1150 = vpop.f32.mrb[0].mxu0
        %v1151 = vadd.f32 %v1093, %v1150
        %v1152 = vpop.f32.mrb[0].mxu0
        %v1153 = vpop.f32.mrb[0].mxu0
        %v1154 = vadd.f32 %v1098, %v1153
        %v1155 = vpop.f32.mrb[0].mxu0
        %1156 = vdwg.mxu0
        %v1157 = vmax.f32 %v1151, 0.0
        %v1158 = vmax.f32 %v1154, 0.0
        %v1159 = vld [vmem:[%s11] sm:$0xf]
        %v1160 = vld [vmem:[%s11 + $0x4] sm:$0xf]
        %v1161 = vunpack.c.l.bf16 %v1159
        %v1162 = vunpack.c.l.bf16 %v1160
        %1164 = vset.pattern.permute.xlu0 0
        %1165 = vperm.xlu0 %1164, %v1161
        %v1166 = vpop.permute.xlu0 %1165
        %1169 = vset.pattern.permute.xlu0 0
        %1170 = vperm.xlu0 %1169, %v1162
        %v1171 = vpop.permute.xlu0 %1170
        %v1173 = vmul.f32 %v1166, %v1157
        %v1174 = vmul.f32 %v1171, %v1158
        %v1175 = vadd.f32 %v1173, %v1174
        %v1176 = vrot.slane %v1175, 4
        %v1177 = vadd.f32 %v1175, %v1176
        %v1178 = vrot.slane %v1177, 2
        %v1179 = vadd.f32 %v1177, %v1178
        %v1180 = vrot.slane %v1179, 1
        %v1181 = vadd.f32 %v1179, %v1180
        %v1182 = vld [vmem:[#allocation2] sm:$0x1]
        %1184 = vset.pattern.permute.xlu0 0
        %1185 = vperm.xlu0 %1184, %v1182
        %v1186 = vpop.permute.xlu0 %1185
        %v1188 = vlaneseq
        %v1189 = vshrl.u32 %v1188, 7
        %v1190 = vsub.s32 0, %v1189
        %v1191 = vrot.slane %v1186, %v1190
        %v1192 = vadd.f32 %v1181, %v1191
        %1193 = vst [vmem:[%s508] sm:$0x1] %v1192
        %s1194 = sand.u32 %s315, 1
        %s1195 = scalar_lea.sflag [#allocation5], %s1194
        %s1196 = sand.u32 %s315, 1
        %s1197 = scalar_lea.vmem [#allocation4], %s1196
        // Predicated region
        $region114: #{tpu_custom_call.1} parent=108 // pred_check
          %p1198 = pneg %p325
        $region115: #{tpu_custom_call.1} parent=108 // pred_check_branch
          %1200 = sbr.rel (%p1198) target = $region117
        $region116: #{tpu_custom_call.1} parent=108 // pred_region
          %s1202 = ssub.s32 16, 16
          %1203 = vsyncadd %s1195, %s1202
          %s1204 = smul.addr %s29, 16
          %s1205 = scalar_lea.hbm %s13, %s1204
          %s1207 = sshll.u32 %s1197, 4
          %s1208 = int_to_ptr.vmem [resolvable:$true] %s1207
          %1210 = dma.vmem_to_hbm [thread:$0]  %s1208, 16, %s1205, %s1195
        $region117: #{tpu_custom_call.1} parent=108 // pred_fallthru
          _
      $region109: #{tpu_custom_call.1} parent=5 // pred_fallthru
        _
      %p1211 = scmp.le.s32.totalorder 2, %s24
      // Predicated region
      $region118: #{tpu_custom_call.1} parent=5 // pred_check
        %p1212 = pneg %p1211
      $region119: #{tpu_custom_call.1} parent=5 // pred_check_branch
        %1214 = sbr.rel (%p1212) target = $region121
      $region120: #{tpu_custom_call.1} parent=5 // pred_region
        %s1215 = ssub.s32 %s24, 2
        // Predicated region
        $region122: #{tpu_custom_call.1} parent=120 // pred_check
          %p1216 = pneg %p331
        $region123: #{tpu_custom_call.1} parent=120 // pred_check_branch
          %1218 = sbr.rel (%p1216) target = $region125
        $region124: #{tpu_custom_call.1} parent=120 // pred_region
          %s1219 = sand.u32 %s316, 1
          %s1220 = scalar_lea.sflag [#allocation5], %s1219
          %s1221 = sand.u32 %s316, 1
          %s1222 = scalar_lea.vmem [#allocation4], %s1221
          %1223 = dma.done %s1220, 16
        $region125: #{tpu_custom_call.1} parent=120 // pred_fallthru
          _
      $region121: #{tpu_custom_call.1} parent=5 // pred_fallthru
        _
    $region6: #{tpu_custom_call.1} parent=1 // loop_footer
      %s28 = sadd.s32 1, %s24
    $region7: #{tpu_custom_call.1} parent=1 // loop_footer_branch
      %23 = sbr.rel target = $region3
    $region8: #{tpu_custom_call.1} parent=1 // loop_exit
      _
    %1224 = vsyncpa [#allocation5], 1
    %s1225 = scalar_lea.sflag [#allocation5], 1
    %1226 = vsyncpa %s1225, 1

</llo_original>
